<compile_context>
chip_gen: v7x
topology: tpu7x:2x2x1
jax: 0.10.0
libtpu: 0.0.40
codegen_flags: <defaults>
</compile_context>

<pallas_src>
import jax
import jax.numpy as jnp
from jax.experimental import pallas as pl
from jax.experimental.pallas import tpu as pltpu

INPUT_DIM = 3
N_HIDDEN = 4
LANE = 128   # vreg lane width
SUB = 8      # vreg sublane height; in-kernel sub-slab row count


def _cdiv(a, b):
    return -(-a // b)


def _round_up(a, b):
    return _cdiv(a, b) * b


def mlp_kernel(w1_ref, b1_ref, w2_ref, b2_ref, xt_ref, out_ref):
    # w1 (D,H), b1 (1,H), w2 (H,1), b2 (1,1): f32 scalars in SMEM.
    # xt_ref (D, rows, 128): x transposed, batch spread over sublanes + lanes.
    # out_ref (rows, 128): transposed output tile.
    rows = out_ref.shape[0]
    # Sweep the VMEM tile in (8,128) sub-slabs: ~5 live vregs per step, no spills.
    for r0 in range(0, rows, SUB):
        xs = [xt_ref[d, r0:r0 + SUB, :] for d in range(INPUT_DIM)]   # 3 x (8,128)
        acc = jnp.zeros((SUB, LANE), jnp.float32) + b2_ref[0, 0]     # fc2 bias
        for j in range(N_HIDden if False else N_HIDDEN):             # unrolled: H = 4
            # fc1 row j: broadcast-MAC on the VPU with SMEM scalar weights.
            h = b1_ref[0, j] + w1_ref[0, j] * xs[0]
            for d in range(1, INPUT_DIM):
                h = h + w1_ref[d, j] * xs[d]
            # ReLU followed by clamp(0.0, 0.6) == clip to [0.0, 0.6].
            h = jnp.clip(h, 0.0, 0.6)
            # TODO(synk): the torch forward calls print(out) on this activation;
            # host-side printing has no in-kernel equivalent and is omitted.
            acc = acc + w2_ref[j, 0] * h                              # fc2 MAC
        # sigmoid(acc) = 1/(1+exp(-acc)): exp on the EUP, approx recip off VALU.
        out_ref[r0:r0 + SUB, :] = pl.reciprocal(1.0 + jnp.exp(-acc), approx=True)


def mlp_forward(x, w1, b1, w2, b2, *, block_rows=64):
    """block_rows = sublane rows (of 128 lanes) per grid step -> 8192 batch/step."""
    B, D = x.shape
    assert D == INPUT_DIM

    total_rows = max(1, _cdiv(B, LANE))
    block_rows = max(SUB, min(_round_up(block_rows, SUB), _round_up(total_rows, SUB)))
    n_blocks = _cdiv(total_rows, block_rows)
    # v7x has 2 TensorCores: keep >= 2 parallel blocks when there is enough data.
    if n_blocks == 1 and total_rows >= 2 * SUB:
        block_rows = _round_up(_cdiv(total_rows, 2), SUB)
        n_blocks = _cdiv(total_rows, block_rows)
    padded_rows = n_blocks * block_rows
    Bp = padded_rows * LANE

    # Single pad + reshape/transpose pass: (B, D) -> (D, padded_rows, 128).
    xp = jnp.pad(x, ((0, Bp - B), (0, 0))) if Bp != B else x
    xt = xp.reshape(padded_rows, LANE, D).transpose(2, 0, 1)

    smem = pltpu.MemorySpace.SMEM
    n_params = w1.size + b1.size + w2.size + b2.size
    cost = pl.CostEstimate(
        flops=44 * Bp,                                   # fc1/fc2 MACs + clip + sigmoid adds
        transcendentals=Bp,                              # one exp per element
        bytes_accessed=4 * (INPUT_DIM * Bp + Bp + n_params),
    )

    out_t = pl.pallas_call(
        mlp_kernel,
        out_shape=jax.ShapeDtypeStruct((padded_rows, LANE), jnp.float32),
        grid=(n_blocks,),
        in_specs=[
            pl.BlockSpec(memory_space=smem),                               # w1 (D, H)
            pl.BlockSpec(memory_space=smem),                               # b1 (1, H)
            pl.BlockSpec(memory_space=smem),                               # w2 (H, 1)
            pl.BlockSpec(memory_space=smem),                               # b2 (1, 1)
            pl.BlockSpec((INPUT_DIM, block_rows, LANE), lambda i: (0, i, 0)),  # x^T tile
        ],
        out_specs=pl.BlockSpec((block_rows, LANE), lambda i: (i, 0)),      # out^T tile
        compiler_params=pltpu.CompilerParams(
            dimension_semantics=("parallel",),
        ),
        cost_estimate=cost,
    )(w1, b1, w2, b2, xt)

    return out_t.reshape(Bp)[:B].reshape(B, 1)


def init_params(key, input_dim, n_hidden):
    # Deterministic init mimicking torch's uniform(-1/sqrt(fan_in), 1/sqrt(fan_in)).
    k1, k2, k3, k4 = jax.random.split(key, 4)
    bound1 = 1.0 / jnp.sqrt(input_dim)
    bound2 = 1.0 / jnp.sqrt(n_hidden)
    w1 = jax.random.uniform(k1, (input_dim, n_hidden), jnp.float32, -bound1, bound1)
    b1 = jax.random.uniform(k2, (1, n_hidden), jnp.float32, -bound1, bound1)
    w2 = jax.random.uniform(k3, (n_hidden, 1), jnp.float32, -bound2, bound2)
    b2 = jax.random.uniform(k4, (1, 1), jnp.float32, -bound2, bound2)
    return w1, b1, w2, b2


if __name__ == "__main__":
    key = jax.random.PRNGKey(0)
    kx, kx2, kp = jax.random.split(key, 3)
    w1, b1, w2, b2 = init_params(kp, INPUT_DIM, N_HIDDEN)

    def ref_fwd(xv):
        h = jnp.clip(xv @ w1 + b1, 0.0, 0.6)
        return jax.nn.sigmoid(h @ w2 + b2)

    # Small batch: single block, exercises the lane/sublane padding path.
    x_small = jax.random.normal(kx, (300, INPUT_DIM), jnp.float32)
    out_small = jax.block_until_ready(mlp_forward(x_small, w1, b1, w2, b2))
    assert out_small.shape == (300, 1)
    # atol allows for the approx (EUP) reciprocal used in the sigmoid divide.
    assert jnp.allclose(out_small, ref_fwd(x_small), atol=5e-3), "mismatch (small)"

    # Larger batch: >= 2 grid blocks (v7x two-TC path) and multi-block index maps.
    x_big = jax.random.normal(kx2, (2048, INPUT_DIM), jnp.float32)
    out_big = jax.block_until_ready(mlp_forward(x_big, w1, b1, w2, b2))
    assert out_big.shape == (2048, 1)
    assert jnp.allclose(out_big, ref_fwd(x_big), atol=5e-3), "mismatch (big)"

    print("KERNEL_OK")
</pallas_src>

<mosaic_0001>
module attributes {stable_mosaic.version = 11 : i64} {
  func.func @mlp_kernel(%arg0: i32, %arg1: memref<3x4xf32, #tpu.memory_space<smem>>, %arg2: memref<1x4xf32, #tpu.memory_space<smem>>, %arg3: memref<4x1xf32, #tpu.memory_space<smem>>, %arg4: memref<1x1xf32, #tpu.memory_space<smem>>, %arg5: memref<3x8x128xf32, #tpu.memory_space<vmem>>, %arg6: memref<8x128xf32, #tpu.memory_space<vmem>>) attributes {dimension_semantics = [#tpu.dimension_semantics<parallel>], iteration_bounds = array<i64: 1>, scalar_prefetch = 0 : i64, scratch_operands = 0 : i64, tpu.core_type = #tpu.core_type<tc>, window_params = [{transform_indices = @transform_0, window_bounds = array<i64: 3, 4>}, {transform_indices = @transform_1, window_bounds = array<i64: 1, 4>}, {transform_indices = @transform_2, window_bounds = array<i64: 4, 1>}, {transform_indices = @transform_3, window_bounds = array<i64: 1, 1>}, {transform_indices = @transform_4, window_bounds = array<i64: 3, 8, 128>}, {transform_indices = @transform_5, window_bounds = array<i64: 8, 128>}]} {
    %c0 = arith.constant 0 : index
    %c0_0 = arith.constant 0 : index
    %c0_1 = arith.constant 0 : index
    %0 = vector.load %arg5[%c0, %c0_0, %c0_1] : memref<3x8x128xf32, #tpu.memory_space<vmem>>, vector<1x8x128xf32>
    %1 = vector.shape_cast %0 : vector<1x8x128xf32> to vector<8x128xf32>
    %c1 = arith.constant 1 : index
    %c0_2 = arith.constant 0 : index
    %c0_3 = arith.constant 0 : index
    %2 = vector.load %arg5[%c1, %c0_2, %c0_3] : memref<3x8x128xf32, #tpu.memory_space<vmem>>, vector<1x8x128xf32>
    %3 = vector.shape_cast %2 : vector<1x8x128xf32> to vector<8x128xf32>
    %c2 = arith.constant 2 : index
    %c0_4 = arith.constant 0 : index
    %c0_5 = arith.constant 0 : index
    %4 = vector.load %arg5[%c2, %c0_4, %c0_5] : memref<3x8x128xf32, #tpu.memory_space<vmem>>, vector<1x8x128xf32>
    %5 = vector.shape_cast %4 : vector<1x8x128xf32> to vector<8x128xf32>
    %cst = arith.constant 0.000000e+00 : f32
    %6 = vector.broadcast %cst : f32 to vector<8x128xf32>
    %c0_6 = arith.constant 0 : index
    %c0_7 = arith.constant 0 : index
    %7 = memref.load %arg4[%c0_6, %c0_7] : memref<1x1xf32, #tpu.memory_space<smem>>
    %8 = vector.broadcast %7 : f32 to vector<8x128xf32>
    %9 = arith.addf %6, %8 : vector<8x128xf32>
    %c0_8 = arith.constant 0 : index
    %c0_9 = arith.constant 0 : index
    %10 = memref.load %arg2[%c0_8, %c0_9] : memref<1x4xf32, #tpu.memory_space<smem>>
    %c0_10 = arith.constant 0 : index
    %c0_11 = arith.constant 0 : index
    %11 = memref.load %arg1[%c0_10, %c0_11] : memref<3x4xf32, #tpu.memory_space<smem>>
    %12 = vector.broadcast %11 : f32 to vector<8x128xf32>
    %13 = arith.mulf %12, %1 : vector<8x128xf32>
    %14 = vector.broadcast %10 : f32 to vector<8x128xf32>
    %15 = arith.addf %14, %13 : vector<8x128xf32>
    %c1_12 = arith.constant 1 : index
    %c0_13 = arith.constant 0 : index
    %16 = memref.load %arg1[%c1_12, %c0_13] : memref<3x4xf32, #tpu.memory_space<smem>>
    %17 = vector.broadcast %16 : f32 to vector<8x128xf32>
    %18 = arith.mulf %17, %3 : vector<8x128xf32>
    %19 = arith.addf %15, %18 : vector<8x128xf32>
    %c2_14 = arith.constant 2 : index
    %c0_15 = arith.constant 0 : index
    %20 = memref.load %arg1[%c2_14, %c0_15] : memref<3x4xf32, #tpu.memory_space<smem>>
    %21 = vector.broadcast %20 : f32 to vector<8x128xf32>
    %22 = arith.mulf %21, %5 : vector<8x128xf32>
    %23 = arith.addf %19, %22 : vector<8x128xf32>
    %cst_16 = arith.constant 0.000000e+00 : f32
    %cst_17 = arith.constant 6.000000e-01 : f32
    %24 = vector.broadcast %cst_16 : f32 to vector<8x128xf32>
    %25 = arith.maximumf %24, %23 : vector<8x128xf32>
    %26 = vector.broadcast %cst_17 : f32 to vector<8x128xf32>
    %27 = arith.minimumf %26, %25 : vector<8x128xf32>
    %c0_18 = arith.constant 0 : index
    %c0_19 = arith.constant 0 : index
    %28 = memref.load %arg3[%c0_18, %c0_19] : memref<4x1xf32, #tpu.memory_space<smem>>
    %29 = vector.broadcast %28 : f32 to vector<8x128xf32>
    %30 = arith.mulf %29, %27 : vector<8x128xf32>
    %31 = arith.addf %9, %30 : vector<8x128xf32>
    %c0_20 = arith.constant 0 : index
    %c1_21 = arith.constant 1 : index
    %32 = memref.load %arg2[%c0_20, %c1_21] : memref<1x4xf32, #tpu.memory_space<smem>>
    %c0_22 = arith.constant 0 : index
    %c1_23 = arith.constant 1 : index
    %33 = memref.load %arg1[%c0_22, %c1_23] : memref<3x4xf32, #tpu.memory_space<smem>>
    %34 = vector.broadcast %33 : f32 to vector<8x128xf32>
    %35 = arith.mulf %34, %1 : vector<8x128xf32>
    %36 = vector.broadcast %32 : f32 to vector<8x128xf32>
    %37 = arith.addf %36, %35 : vector<8x128xf32>
    %c1_24 = arith.constant 1 : index
    %c1_25 = arith.constant 1 : index
    %38 = memref.load %arg1[%c1_24, %c1_25] : memref<3x4xf32, #tpu.memory_space<smem>>
    %39 = vector.broadcast %38 : f32 to vector<8x128xf32>
    %40 = arith.mulf %39, %3 : vector<8x128xf32>
    %41 = arith.addf %37, %40 : vector<8x128xf32>
    %c2_26 = arith.constant 2 : index
    %c1_27 = arith.constant 1 : index
    %42 = memref.load %arg1[%c2_26, %c1_27] : memref<3x4xf32, #tpu.memory_space<smem>>
    %43 = vector.broadcast %42 : f32 to vector<8x128xf32>
    %44 = arith.mulf %43, %5 : vector<8x128xf32>
    %45 = arith.addf %41, %44 : vector<8x128xf32>
    %cst_28 = arith.constant 0.000000e+00 : f32
    %cst_29 = arith.constant 6.000000e-01 : f32
    %46 = vector.broadcast %cst_28 : f32 to vector<8x128xf32>
    %47 = arith.maximumf %46, %45 : vector<8x128xf32>
    %48 = vector.broadcast %cst_29 : f32 to vector<8x128xf32>
    %49 = arith.minimumf %48, %47 : vector<8x128xf32>
    %c1_30 = arith.constant 1 : index
    %c0_31 = arith.constant 0 : index
    %50 = memref.load %arg3[%c1_30, %c0_31] : memref<4x1xf32, #tpu.memory_space<smem>>
    %51 = vector.broadcast %50 : f32 to vector<8x128xf32>
    %52 = arith.mulf %51, %49 : vector<8x128xf32>
    %53 = arith.addf %31, %52 : vector<8x128xf32>
    %c0_32 = arith.constant 0 : index
    %c2_33 = arith.constant 2 : index
    %54 = memref.load %arg2[%c0_32, %c2_33] : memref<1x4xf32, #tpu.memory_space<smem>>
    %c0_34 = arith.constant 0 : index
    %c2_35 = arith.constant 2 : index
    %55 = memref.load %arg1[%c0_34, %c2_35] : memref<3x4xf32, #tpu.memory_space<smem>>
    %56 = vector.broadcast %55 : f32 to vector<8x128xf32>
    %57 = arith.mulf %56, %1 : vector<8x128xf32>
    %58 = vector.broadcast %54 : f32 to vector<8x128xf32>
    %59 = arith.addf %58, %57 : vector<8x128xf32>
    %c1_36 = arith.constant 1 : index
    %c2_37 = arith.constant 2 : index
    %60 = memref.load %arg1[%c1_36, %c2_37] : memref<3x4xf32, #tpu.memory_space<smem>>
    %61 = vector.broadcast %60 : f32 to vector<8x128xf32>
    %62 = arith.mulf %61, %3 : vector<8x128xf32>
    %63 = arith.addf %59, %62 : vector<8x128xf32>
    %c2_38 = arith.constant 2 : index
    %c2_39 = arith.constant 2 : index
    %64 = memref.load %arg1[%c2_38, %c2_39] : memref<3x4xf32, #tpu.memory_space<smem>>
    %65 = vector.broadcast %64 : f32 to vector<8x128xf32>
    %66 = arith.mulf %65, %5 : vector<8x128xf32>
    %67 = arith.addf %63, %66 : vector<8x128xf32>
    %cst_40 = arith.constant 0.000000e+00 : f32
    %cst_41 = arith.constant 6.000000e-01 : f32
    %68 = vector.broadcast %cst_40 : f32 to vector<8x128xf32>
    %69 = arith.maximumf %68, %67 : vector<8x128xf32>
    %70 = vector.broadcast %cst_41 : f32 to vector<8x128xf32>
    %71 = arith.minimumf %70, %69 : vector<8x128xf32>
    %c2_42 = arith.constant 2 : index
    %c0_43 = arith.constant 0 : index
    %72 = memref.load %arg3[%c2_42, %c0_43] : memref<4x1xf32, #tpu.memory_space<smem>>
    %73 = vector.broadcast %72 : f32 to vector<8x128xf32>
    %74 = arith.mulf %73, %71 : vector<8x128xf32>
    %75 = arith.addf %53, %74 : vector<8x128xf32>
    %c0_44 = arith.constant 0 : index
    %c3 = arith.constant 3 : index
    %76 = memref.load %arg2[%c0_44, %c3] : memref<1x4xf32, #tpu.memory_space<smem>>
    %c0_45 = arith.constant 0 : index
    %c3_46 = arith.constant 3 : index
    %77 = memref.load %arg1[%c0_45, %c3_46] : memref<3x4xf32, #tpu.memory_space<smem>>
    %78 = vector.broadcast %77 : f32 to vector<8x128xf32>
    %79 = arith.mulf %78, %1 : vector<8x128xf32>
    %80 = vector.broadcast %76 : f32 to vector<8x128xf32>
    %81 = arith.addf %80, %79 : vector<8x128xf32>
    %c1_47 = arith.constant 1 : index
    %c3_48 = arith.constant 3 : index
    %82 = memref.load %arg1[%c1_47, %c3_48] : memref<3x4xf32, #tpu.memory_space<smem>>
    %83 = vector.broadcast %82 : f32 to vector<8x128xf32>
    %84 = arith.mulf %83, %3 : vector<8x128xf32>
    %85 = arith.addf %81, %84 : vector<8x128xf32>
    %c2_49 = arith.constant 2 : index
    %c3_50 = arith.constant 3 : index
    %86 = memref.load %arg1[%c2_49, %c3_50] : memref<3x4xf32, #tpu.memory_space<smem>>
    %87 = vector.broadcast %86 : f32 to vector<8x128xf32>
    %88 = arith.mulf %87, %5 : vector<8x128xf32>
    %89 = arith.addf %85, %88 : vector<8x128xf32>
    %cst_51 = arith.constant 0.000000e+00 : f32
    %cst_52 = arith.constant 6.000000e-01 : f32
    %90 = vector.broadcast %cst_51 : f32 to vector<8x128xf32>
    %91 = arith.maximumf %90, %89 : vector<8x128xf32>
    %92 = vector.broadcast %cst_52 : f32 to vector<8x128xf32>
    %93 = arith.minimumf %92, %91 : vector<8x128xf32>
    %c3_53 = arith.constant 3 : index
    %c0_54 = arith.constant 0 : index
    %94 = memref.load %arg3[%c3_53, %c0_54] : memref<4x1xf32, #tpu.memory_space<smem>>
    %95 = vector.broadcast %94 : f32 to vector<8x128xf32>
    %96 = arith.mulf %95, %93 : vector<8x128xf32>
    %97 = arith.addf %75, %96 : vector<8x128xf32>
    %cst_55 = arith.constant 0.000000e+00 : f32
    %98 = vector.broadcast %cst_55 : f32 to vector<8x128xf32>
    %99 = arith.subf %98, %97 : vector<8x128xf32>
    %100 = math.exp %99 : vector<8x128xf32>
    %cst_56 = arith.constant 1.000000e+00 : f32
    %101 = vector.broadcast %cst_56 : f32 to vector<8x128xf32>
    %102 = arith.addf %101, %100 : vector<8x128xf32>
    %103 = tpu.reciprocal %102 {approx = true} : vector<8x128xf32> -> vector<8x128xf32>
    %c0_57 = arith.constant 0 : index
    %c0_58 = arith.constant 0 : index
    %104 = vector.load %arg6[%c0_57, %c0_58] : memref<8x128xf32, #tpu.memory_space<vmem>>, vector<8x128xf32>
    tpu.vector_store %arg6[%c0_57, %c0_58], %103 {strides = array<i32>} : memref<8x128xf32, #tpu.memory_space<vmem>>, vector<8x128xf32>,
    return
  }
  func.func @transform_0(%arg0: i32) -> (i32, i32) {
    %c0_i32 = arith.constant 0 : i32
    %c0_i32_0 = arith.constant 0 : i32
    %c0_i32_1 = arith.constant 0 : i32
    return %c0_i32, %c0_i32_0 : i32, i32
  }
  func.func @transform_1(%arg0: i32) -> (i32, i32) {
    %c0_i32 = arith.constant 0 : i32
    %c0_i32_0 = arith.constant 0 : i32
    %c0_i32_1 = arith.constant 0 : i32
    return %c0_i32, %c0_i32_0 : i32, i32
  }
  func.func @transform_2(%arg0: i32) -> (i32, i32) {
    %c0_i32 = arith.constant 0 : i32
    %c0_i32_0 = arith.constant 0 : i32
    %c0_i32_1 = arith.constant 0 : i32
    return %c0_i32, %c0_i32_0 : i32, i32
  }
  func.func @transform_3(%arg0: i32) -> (i32, i32) {
    %c0_i32 = arith.constant 0 : i32
    %c0_i32_0 = arith.constant 0 : i32
    %c0_i32_1 = arith.constant 0 : i32
    return %c0_i32, %c0_i32_0 : i32, i32
  }
  func.func @transform_4(%arg0: i32) -> (i32, i32, i32) {
    %c0_i32 = arith.constant 0 : i32
    %c0_i32_0 = arith.constant 0 : i32
    %c0_i32_1 = arith.constant 0 : i32
    return %c0_i32, %arg0, %c0_i32_0 : i32, i32, i32
  }
  func.func @transform_5(%arg0: i32) -> (i32, i32) {
    %c0_i32 = arith.constant 0 : i32
    %c0_i32_0 = arith.constant 0 : i32
    return %arg0, %c0_i32 : i32, i32
  }
}

</mosaic_0001>

<llo_original>
// kernel: tpu_custom_call.1
$region0: #{tpu_custom_call.1}
  #allocation0 [shape = 'u32[]', space=smem, size = 0x4, offset = 0x4, fixed_abs, tag = 'smem constant byte address 0x4 - core index']
  #allocation1 [shape = 'u32[144,128]{1,0:T(1,128)}', space=vmem, size = 0x12000, scoped, tag = 'internal scratch']
  #allocation2 [shape = 'f32[1,1]{1,0:T(1,128)S(6)}', space=smem, size = 0x200, scoped, tag = 'scoped memory for tpu_custom_call.1']
  %s0 = inlined_call_operand.vmem [shape: f32[3,4], index: 0, kind: input, shape index: {}]
  %s1 = inlined_call_operand.vmem [shape: f32[1,4], index: 1, kind: input, shape index: {}]
  %s2 = inlined_call_operand.vmem [shape: f32[4,1], index: 2, kind: input, shape index: {}]
  %s3 = inlined_call_operand.<no memory space> [shape: f32[1,1], index: 3, kind: input, shape index: {}]
  %s4 = inlined_call_operand.hbm [shape: f32[3,8,128], index: 4, kind: input, shape index: {}]
  %s5 = inlined_call_operand.hbm [shape: f32[8,128], index: 5, kind: output, shape index: {}]
  %s6 = sld [smem:[#allocation0]]
  $region46: #{tpu_custom_call.1} parent=0
    _
  %s8 = ssub.s32 1, %s6
  %s9 = scalar_select 0, %s8, %s6
  %10 = sst [smem:[#allocation2]] %s3
  $region1: #{tpu_custom_call.1} parent=0
    #allocation3 [shape = 'u8[2048]{0}', space=smem, size = 0x800, scoped, tag = 'input window, operand 0, single buffered']
    #allocation4 [shape = 's32[1]{0}', space=sflag, size = 0x4, scoped, tag = 'scoped memory for tpu_custom_call.1']
    #allocation5 [shape = 's32[1]{0}', space=sflag, size = 0x4, scoped, tag = 'scoped memory for tpu_custom_call.1']
    #allocation6 [shape = 's32[1]{0}', space=sflag, size = 0x4, scoped, tag = 'scoped memory for tpu_custom_call.1']
    #allocation7 [shape = 'u8[512]{0}', space=smem, size = 0x200, scoped, tag = 'input window, operand 1, single buffered']
    #allocation8 [shape = 's32[1]{0}', space=sflag, size = 0x4, scoped, tag = 'scoped memory for tpu_custom_call.1']
    #allocation9 [shape = 'u8[2048]{0}', space=smem, size = 0x800, scoped, tag = 'input window, operand 2, single buffered']
    #allocation10 [shape = 'u8[12288]{0}', space=vmem, size = 0x3000, scoped, tag = 'input window, operand 4, single buffered']
    #allocation11 [shape = 'u8[4096]{0}', space=vmem, size = 0x1000, scoped, tag = 'output window, operand 0, single buffered']
    %11 = vsyncpa [#allocation6], 0
    %12 = vsyncpa [#allocation8], 0
    %13 = vsyncpa [#allocation4], 0
    %14 = vsyncpa [#allocation5], 0
    // Predicated region
    $region2: #{tpu_custom_call.1} parent=1 // pred_check
      _
    $region3: #{tpu_custom_call.1} parent=1 // pred_check_branch
      %16 = sbr.rel (0) target = $region5
    $region4: #{tpu_custom_call.1} parent=1 // pred_region
      %s18 = ssub.s32 64, 64
      %19 = vsyncadd [#allocation6], %s18
      %s21 = sshll.u32 %s0, 4
      %s22 = int_to_ptr.vmem [resolvable:$true] %s21
      %24 = dma.vmem_to_smem %s22, 64, [#allocation3], [#allocation6]
    $region5: #{tpu_custom_call.1} parent=1 // pred_fallthru
      _
    // Predicated region
    $region6: #{tpu_custom_call.1} parent=1 // pred_check
      _
    $region7: #{tpu_custom_call.1} parent=1 // pred_check_branch
      %26 = sbr.rel (0) target = $region9
    $region8: #{tpu_custom_call.1} parent=1 // pred_region
      %s28 = ssub.s32 16, 16
      %29 = vsyncadd [#allocation8], %s28
      %s31 = sshll.u32 %s1, 4
      %s32 = int_to_ptr.vmem [resolvable:$true] %s31
      %34 = dma.vmem_to_smem %s32, 16, [#allocation7], [#allocation8]
    $region9: #{tpu_custom_call.1} parent=1 // pred_fallthru
      _
    // Predicated region
    $region10: #{tpu_custom_call.1} parent=1 // pred_check
      _
    $region11: #{tpu_custom_call.1} parent=1 // pred_check_branch
      %36 = sbr.rel (0) target = $region13
    $region12: #{tpu_custom_call.1} parent=1 // pred_region
      %s38 = ssub.s32 64, 64
      %39 = vsyncadd [#allocation8], %s38
      %s41 = sshll.u32 %s2, 4
      %s42 = int_to_ptr.vmem [resolvable:$true] %s41
      %44 = dma.vmem_to_smem %s42, 64, [#allocation9], [#allocation8]
    $region13: #{tpu_custom_call.1} parent=1 // pred_fallthru
      _
    // Predicated region
    $region14: #{tpu_custom_call.1} parent=1 // pred_check
      _
    $region15: #{tpu_custom_call.1} parent=1 // pred_check_branch
      %46 = sbr.rel (0) target = $region17
    $region16: #{tpu_custom_call.1} parent=1 // pred_region
      _
    $region17: #{tpu_custom_call.1} parent=1 // pred_fallthru
      _
    // Predicated region
    $region18: #{tpu_custom_call.1} parent=1 // pred_check
      _
    $region19: #{tpu_custom_call.1} parent=1 // pred_check_branch
      %48 = sbr.rel (0) target = $region21
    $region20: #{tpu_custom_call.1} parent=1 // pred_region
      %s50 = ssub.s32 384, 384
      %51 = vsyncadd [#allocation4], %s50
      %s52 = sshll.u32 [#allocation10], 4
      %s53 = int_to_ptr.vmem [resolvable:$true] %s52
      %58 = dma.hbm_to_vmem [thread:$0]  %s4, 384, %s53, [#allocation4], 128, 128, 8
    $region21: #{tpu_custom_call.1} parent=1 // pred_fallthru
      _
    // Predicated region
    $region22: #{tpu_custom_call.1} parent=1 // pred_check
      _
    $region23: #{tpu_custom_call.1} parent=1 // pred_check_branch
      %60 = sbr.rel (0) target = $region25
    $region24: #{tpu_custom_call.1} parent=1 // pred_region
      %61 = dma.done [#allocation6], 64
    $region25: #{tpu_custom_call.1} parent=1 // pred_fallthru
      _
    // Predicated region
    $region26: #{tpu_custom_call.1} parent=1 // pred_check
      _
    $region27: #{tpu_custom_call.1} parent=1 // pred_check_branch
      %63 = sbr.rel (0) target = $region29
    $region28: #{tpu_custom_call.1} parent=1 // pred_region
      %64 = dma.done [#allocation8], 16
    $region29: #{tpu_custom_call.1} parent=1 // pred_fallthru
      _
    // Predicated region
    $region30: #{tpu_custom_call.1} parent=1 // pred_check
      _
    $region31: #{tpu_custom_call.1} parent=1 // pred_check_branch
      %66 = sbr.rel (0) target = $region33
    $region32: #{tpu_custom_call.1} parent=1 // pred_region
      %67 = dma.done [#allocation8], 64
    $region33: #{tpu_custom_call.1} parent=1 // pred_fallthru
      _
    // Predicated region
    $region34: #{tpu_custom_call.1} parent=1 // pred_check
      _
    $region35: #{tpu_custom_call.1} parent=1 // pred_check_branch
      %69 = sbr.rel (0) target = $region37
    $region36: #{tpu_custom_call.1} parent=1 // pred_region
      %70 = dma.done [#allocation4], 384
    $region37: #{tpu_custom_call.1} parent=1 // pred_fallthru
      _
    %71 = sfence
    %v72 = vld [vmem:[#allocation10] sm:$0xff]
    %s73 = scalar_lea.vmem [#allocation10], 8
    %v74 = vld [vmem:[%s73] sm:$0xff]
    %s75 = scalar_lea.vmem [#allocation10], 16
    %v76 = vld [vmem:[%s75] sm:$0xff]
    %s77 = sld [smem:[#allocation2]]
    %v78 = vstv %s77
    %v79 = vadd.f32 %v78, 0.0
    %s80 = sld [smem:[#allocation7]]
    %s81 = sld [smem:[#allocation3]]
    %v82 = vstv %s81
    %v83 = vmul.f32 %v82, %v72
    %v84 = vstv %s80
    %v85 = vadd.f32 %v84, %v83
    %s86 = sld [smem:[#allocation3 + $0x80]]
    %v87 = vstv %s86
    %v88 = vmul.f32 %v87, %v74
    %v89 = vadd.f32 %v85, %v88
    %s90 = sld [smem:[#allocation3 + $0x100]]
    %v91 = vstv %s90
    %v92 = vmul.f32 %v91, %v76
    %v93 = vadd.f32 %v89, %v92
    %v94 = vmax.f32 %v93, 0.0
    %v95 = vmin.f32 %v94, 0.6
    %s96 = sld [smem:[#allocation9]]
    %v97 = vstv %s96
    %v98 = vmul.f32 %v97, %v95
    %v99 = vadd.f32 %v79, %v98
    %s100 = sld [smem:[#allocation7 + $0x1]]
    %s101 = sld [smem:[#allocation3 + $0x1]]
    %v102 = vstv %s101
    %v103 = vmul.f32 %v102, %v72
    %v104 = vstv %s100
    %v105 = vadd.f32 %v104, %v103
    %s106 = sld [smem:[#allocation3 + $0x81]]
    %v107 = vstv %s106
    %v108 = vmul.f32 %v107, %v74
    %v109 = vadd.f32 %v105, %v108
    %s110 = sld [smem:[#allocation3 + $0x101]]
    %v111 = vstv %s110
    %v112 = vmul.f32 %v111, %v76
    %v113 = vadd.f32 %v109, %v112
    %v114 = vmax.f32 %v113, 0.0
    %v115 = vmin.f32 %v114, 0.6
    %s116 = sld [smem:[#allocation9 + $0x80]]
    %v117 = vstv %s116
    %v118 = vmul.f32 %v117, %v115
    %v119 = vadd.f32 %v99, %v118
    %s120 = sld [smem:[#allocation7 + $0x2]]
    %s121 = sld [smem:[#allocation3 + $0x2]]
    %v122 = vstv %s121
    %v123 = vmul.f32 %v122, %v72
    %v124 = vstv %s120
    %v125 = vadd.f32 %v124, %v123
    %s126 = sld [smem:[#allocation3 + $0x82]]
    %v127 = vstv %s126
    %v128 = vmul.f32 %v127, %v74
    %v129 = vadd.f32 %v125, %v128
    %s130 = sld [smem:[#allocation3 + $0x102]]
    %v131 = vstv %s130
    %v132 = vmul.f32 %v131, %v76
    %v133 = vadd.f32 %v129, %v132
    %v134 = vmax.f32 %v133, 0.0
    %v135 = vmin.f32 %v134, 0.6
    %s136 = sld [smem:[#allocation9 + $0x100]]
    %v137 = vstv %s136
    %v138 = vmul.f32 %v137, %v135
    %v139 = vadd.f32 %v119, %v138
    %s140 = sld [smem:[#allocation7 + $0x3]]
    %s141 = sld [smem:[#allocation3 + $0x3]]
    %v142 = vstv %s141
    %v143 = vmul.f32 %v142, %v72
    %v144 = vstv %s140
    %v145 = vadd.f32 %v144, %v143
    %s146 = sld [smem:[#allocation3 + $0x83]]
    %v147 = vstv %s146
    %v148 = vmul.f32 %v147, %v74
    %v149 = vadd.f32 %v145, %v148
    %s150 = sld [smem:[#allocation3 + $0x103]]
    %v151 = vstv %s150
    %v152 = vmul.f32 %v151, %v76
    %v153 = vadd.f32 %v149, %v152
    %v154 = vmax.f32 %v153, 0.0
    %v155 = vmin.f32 %v154, 0.6
    %s156 = sld [smem:[#allocation9 + $0x180]]
    %v157 = vstv %s156
    %v158 = vmul.f32 %v157, %v155
    %v159 = vadd.f32 %v139, %v158
    %v160 = vsub.f32 0.0, %v159
    %v161 = vmul.f32 %v160, 1.442695
    %v162 = vpow.pop %v161
    %v163 = vadd.f32 %v162, 1.0
    %v164 = vrcp.pop %v163
    %165 = vst [vmem:[#allocation11] sm:$0xff] %v164
    // Predicated region
    $region38: #{tpu_custom_call.1} parent=1 // pred_check
      _
    $region39: #{tpu_custom_call.1} parent=1 // pred_check_branch
      %167 = sbr.rel (0) target = $region41
    $region40: #{tpu_custom_call.1} parent=1 // pred_region
      %s169 = ssub.s32 128, 128
      %170 = vsyncadd [#allocation5], %s169
      %s172 = sshll.u32 [#allocation11], 4
      %s173 = int_to_ptr.vmem [resolvable:$true] %s172
      %175 = dma.vmem_to_hbm [thread:$0]  %s173, 128, %s5, [#allocation5]
    $region41: #{tpu_custom_call.1} parent=1 // pred_fallthru
      _
    // Predicated region
    $region42: #{tpu_custom_call.1} parent=1 // pred_check
      _
    $region43: #{tpu_custom_call.1} parent=1 // pred_check_branch
      %177 = sbr.rel (0) target = $region45
    $region44: #{tpu_custom_call.1} parent=1 // pred_region
      %178 = dma.done [#allocation5], 128
    $region45: #{tpu_custom_call.1} parent=1 // pred_fallthru
      _
    %179 = vsyncpa [#allocation4], 1
    %180 = vsyncpa [#allocation5], 1
    %181 = vsyncpa [#allocation6], 1
    %182 = vsyncpa [#allocation8], 1

</llo_original>
